<compile_context>
chip_gen: v5e
topology: v5e:2x2
jax: 0.10.0
libtpu: 0.0.40
codegen_flags: <defaults>
</compile_context>

<pallas_src>
import jax
import jax.numpy as jnp
from jax.experimental import pallas as pl
from jax.experimental.pallas import tpu as pltpu


_LANE = 128
_TARGET_BLOCK_BYTES = 4 * 1024 * 1024   # ~4 MiB blocks: near HBM roofline
_MAX_BLOCK_BYTES = 8 * 1024 * 1024      # hard cap so 4x block <= 32 MiB VMEM
_VMEM_LIMIT_BYTES = 48 * 1024 * 1024    # headroom on v7x (64 MiB physical)


def _identity_kernel(x_ref, o_ref):
    # Whole forward pass: a straight VMEM block copy.
    o_ref[...] = x_ref[...]


def _sublane_multiple(dtype) -> int:
    """Packed-sublane tiling requirement: 8 (f32), 16 (bf16), 32 (int8)."""
    bits = jnp.dtype(dtype).itemsize * 8
    return max(8, 256 // bits)


def _pick_lanes(n: int, sub: int) -> int:
    """Largest lane width (multiple of 128, <= 4096) that divides n.

    Prefer a width that still leaves >= `sub` rows; fall back to any divisor.
    Returns 0 if n is not 128-aligned (ragged path).
    """
    cands = (4096, 2048, 1024, 512, 256, 128)
    for c in cands:
        if n % c == 0 and (n // c) >= sub:
            return c
    for c in cands:
        if n % c == 0:
            return c
    return 0


def _pick_tile_rows(rows: int, lanes: int, itemsize: int, sub: int) -> int:
    """Largest sublane-aligned divisor of `rows` under the VMEM block budget."""
    row_bytes = lanes * itemsize
    cap = min(rows,
              max(1, _TARGET_BLOCK_BYTES // row_bytes),
              max(1, _MAX_BLOCK_BYTES // row_bytes))
    best = None
    for t in range(sub, cap + 1, sub):
        if rows % t == 0:
            best = t
    if best is None:
        # No aligned divisor <= cap; a full-extent block is always legal.
        return rows
    # Keep >= 2 grid steps when possible so both v7x TensorCores move data.
    while rows // best < 2 and best % (2 * sub) == 0:
        best //= 2
    return best


def _copy_2d(x2d, rows: int, lanes: int, itemsize: int, sub: int, n_elems: int):
    tile_rows = _pick_tile_rows(rows, lanes, itemsize, sub)
    grid = (rows // tile_rows,)
    return pl.pallas_call(
        _identity_kernel,
        out_shape=jax.ShapeDtypeStruct((rows, lanes), x2d.dtype),
        grid_spec=pltpu.PrefetchScalarGridSpec(
            num_scalar_prefetch=0,
            grid=grid,
            in_specs=[pl.BlockSpec((tile_rows, lanes), lambda i: (i, 0))],
            out_specs=pl.BlockSpec((tile_rows, lanes), lambda i: (i, 0)),
        ),
        compiler_params=pltpu.CompilerParams(
            dimension_semantics=("parallel",),
            vmem_limit_bytes=_VMEM_LIMIT_BYTES,
        ),
        cost_estimate=pl.CostEstimate(
            flops=0,
            transcendentals=0,
            bytes_accessed=2 * n_elems * itemsize,
        ),
    )(x2d)


def example_net_forward(x):
    """Pallas implementation of ExampleNet.forward (identity)."""
    orig_shape = x.shape
    n = 1
    for d in orig_shape:
        n *= d
    if n == 0:
        return x

    itemsize = jnp.dtype(x.dtype).itemsize
    sub = _sublane_multiple(x.dtype)

    lanes = _pick_lanes(n, sub)
    if lanes:
        # Aligned fast path: metadata-only reshape, no pad / no slice, so the
        # only HBM traffic is the kernel's own read + write (2N bytes).
        rows = n // lanes
        out2d = _copy_2d(x.reshape(rows, lanes), rows, lanes, itemsize, sub, n)
        return out2d.reshape(orig_shape)

    # Ragged tail (rare): pad to a (sub*128)-aligned length, copy, slice back.
    lanes = _LANE
    chunk = sub * lanes
    padded_n = ((n + chunk - 1) // chunk) * chunk
    flat = jnp.pad(x.reshape(-1), (0, padded_n - n))
    rows = padded_n // lanes
    out2d = _copy_2d(flat.reshape(rows, lanes), rows, lanes, itemsize, sub,
                     padded_n)
    return out2d.reshape(-1)[:n].reshape(orig_shape)


if __name__ == "__main__":
    key = jax.random.PRNGKey(0)
    # Small NCHW input consistent with a conv-style module: batch=2, ch=4, 16x16
    x = jax.random.normal(key, (2, 4, 16, 16), dtype=jnp.float32)

    y = jax.block_until_ready(example_net_forward(x))

    assert y.shape == x.shape and y.dtype == x.dtype
    assert bool(jnp.array_equal(y, x))
    print("KERNEL_OK")
</pallas_src>

<mosaic_0001>
module attributes {stable_mosaic.version = 11 : i64} {
  func.func @_identity_kernel(%arg0: i32, %arg1: memref<8x256xf32, #tpu.memory_space<vmem>>, %arg2: memref<8x256xf32, #tpu.memory_space<vmem>>) attributes {dimension_semantics = [#tpu.dimension_semantics<parallel>], iteration_bounds = array<i64: 1>, scalar_prefetch = 0 : i64, scratch_operands = 0 : i64, tpu.core_type = #tpu.core_type<tc>, window_params = [{transform_indices = @transform_0, window_bounds = array<i64: 8, 256>}, {transform_indices = @transform_1, window_bounds = array<i64: 8, 256>}]} {
    %c0 = arith.constant 0 : index
    %c0_0 = arith.constant 0 : index
    %0 = vector.load %arg1[%c0, %c0_0] : memref<8x256xf32, #tpu.memory_space<vmem>>, vector<8x256xf32>
    %c0_1 = arith.constant 0 : index
    %c0_2 = arith.constant 0 : index
    %1 = vector.load %arg2[%c0_1, %c0_2] : memref<8x256xf32, #tpu.memory_space<vmem>>, vector<8x256xf32>
    tpu.vector_store %arg2[%c0_1, %c0_2], %0 {strides = array<i32>} : memref<8x256xf32, #tpu.memory_space<vmem>>, vector<8x256xf32>,
    return
  }
  func.func @transform_0(%arg0: i32) -> (i32, i32) {
    %c0_i32 = arith.constant 0 : i32
    %c0_i32_0 = arith.constant 0 : i32
    return %arg0, %c0_i32 : i32, i32
  }
  func.func @transform_1(%arg0: i32) -> (i32, i32) {
    %c0_i32 = arith.constant 0 : i32
    %c0_i32_0 = arith.constant 0 : i32
    return %arg0, %c0_i32 : i32, i32
  }
}

</mosaic_0001>

<llo_original>
// kernel: tpu_custom_call.1
$region0: #{tpu_custom_call.1}
  #allocation0 [shape = 'u32[]', space=smem, size = 0x4, offset = 0x4, fixed_abs, tag = 'smem constant byte address 0x4 - core index']
  #allocation1 [shape = 'u32[72,128]{1,0:T(1,128)}', space=vmem, size = 0x9000, scoped, tag = 'internal scratch']
  %s0 = inlined_call_operand.hbm [shape: f32[8,256], index: 0, kind: input, shape index: {}]
  %s1 = inlined_call_operand.hbm [shape: f32[8,256], index: 1, kind: output, shape index: {}]
  %s2 = sld [smem:[#allocation0]]
  $region18: #{tpu_custom_call.1} parent=0
    _
  %s4 = ssub.s32 1, %s2
  %s5 = scalar_select 0, %s4, %s2
  $region1: #{tpu_custom_call.1} parent=0
    #allocation2 [shape = 'u8[8192]{0}', space=vmem, size = 0x2000, scoped, tag = 'input window, operand 0, single buffered']
    #allocation3 [shape = 's32[1]{0}', space=sflag, size = 0x4, scoped, tag = 'scoped memory for tpu_custom_call.1']
    #allocation4 [shape = 's32[1]{0}', space=sflag, size = 0x4, scoped, tag = 'scoped memory for tpu_custom_call.1']
    #allocation5 [shape = 'u8[8192]{0}', space=vmem, size = 0x2000, scoped, tag = 'output window, operand 0, single buffered']
    %6 = vsyncpa [#allocation3], 0
    %7 = vsyncpa [#allocation4], 0
    // Predicated region
    $region2: #{tpu_custom_call.1} parent=1 // pred_check
      _
    $region3: #{tpu_custom_call.1} parent=1 // pred_check_branch
      %9 = sbr.rel (0) target = $region5
    $region4: #{tpu_custom_call.1} parent=1 // pred_region
      %11 = vsyncadd [#allocation3], 0
      %s13 = sshll.u32 %s0, 4
      %s14 = int_to_ptr.hbm [resolvable:$true] %s13
      %s15 = sshll.u32 [#allocation2], 4
      %s16 = int_to_ptr.vmem [resolvable:$true] %s15
      %18 = dma.hbm_to_vmem [thread:$0]  %s14, 256, %s16, [#allocation3]
    $region5: #{tpu_custom_call.1} parent=1 // pred_fallthru
      _
    // Predicated region
    $region6: #{tpu_custom_call.1} parent=1 // pred_check
      _
    $region7: #{tpu_custom_call.1} parent=1 // pred_check_branch
      %20 = sbr.rel (0) target = $region9
    $region8: #{tpu_custom_call.1} parent=1 // pred_region
      %22 = dma.done [#allocation3], 256
    $region9: #{tpu_custom_call.1} parent=1 // pred_fallthru
      _
    %v23 = vld [vmem:[#allocation2] sm:$0xff]
    %v24 = vld [vmem:[#allocation2 + $0x8] sm:$0xff]
    %25 = vst [vmem:[#allocation5] sm:$0xff] %v23
    %26 = vst [vmem:[#allocation5 + $0x8] sm:$0xff] %v24
    // Predicated region
    $region10: #{tpu_custom_call.1} parent=1 // pred_check
      _
    $region11: #{tpu_custom_call.1} parent=1 // pred_check_branch
      %28 = sbr.rel (0) target = $region13
    $region12: #{tpu_custom_call.1} parent=1 // pred_region
      %30 = vsyncadd [#allocation4], 0
      %s32 = sshll.u32 [#allocation5], 4
      %s33 = int_to_ptr.vmem [resolvable:$true] %s32
      %s34 = sshll.u32 %s1, 4
      %s35 = int_to_ptr.hbm [resolvable:$true] %s34
      %37 = dma.vmem_to_hbm [thread:$0]  %s33, 256, %s35, [#allocation4]
    $region13: #{tpu_custom_call.1} parent=1 // pred_fallthru
      _
    // Predicated region
    $region14: #{tpu_custom_call.1} parent=1 // pred_check
      _
    $region15: #{tpu_custom_call.1} parent=1 // pred_check_branch
      %39 = sbr.rel (0) target = $region17
    $region16: #{tpu_custom_call.1} parent=1 // pred_region
      %41 = dma.done [#allocation4], 256
    $region17: #{tpu_custom_call.1} parent=1 // pred_fallthru
      _
    %42 = vsyncpa [#allocation3], 1
    %43 = vsyncpa [#allocation4], 1

</llo_original>
